<compile_context>
chip_gen: v7x
topology: tpu7x:2x2x1
jax: 0.10.0
libtpu: 0.0.40
codegen_flags: <defaults>
</compile_context>

<pallas_src>
import math
import jax
import jax.numpy as jnp
from jax import lax
from jax.experimental import pallas as pl
from jax.experimental.pallas import tpu as pltpu

B, S, D, H, FF = 2, 8, 32, 4, 64      # batch, seq, d_model, heads, d_ff
DK = D // H                            # per-head dim
R = B * S                              # flattened (batch, seq) rows   = 16
C = H * B * S                          # fused score columns (h,b',s') = 64
EPS = 1e-6
NEG_MASK = -1e9                        # masked_fill value (matches reference)
NEG_BLOCK = -1e30                      # kills cross-batch blocks (exp -> 0)

# row layout of the packed small-vector parameter `vecs` (shape (8, 3*D)):
V_LN1_A, V_LN1_B, V_LN2_A, V_LN2_B, V_BO, V_B2, V_B1, V_BQKV = range(8)


def _layernorm(x, a, b):
    # torch LayerNorm from the reference: mean over last dim, unbiased std,
    # eps added to std.  Exact division (no approx reciprocal) on this path.
    mean = jnp.mean(x, axis=-1, keepdims=True)
    var = jnp.sum((x - mean) ** 2, axis=-1, keepdims=True) / (x.shape[-1] - 1)
    std = jnp.sqrt(var)
    return a * (x - mean) / (std + EPS) + b


def encoder_layer_kernel(x_ref, bias_ref, hsel_ref, bsum_ref,
                         wqkv_ref, wo_ref, w1_ref, w2_ref, vecs_ref, out_ref):
    x = x_ref[...]          # (R, D)  f32, both batches stacked
    bias = bias_ref[...]    # (R, C)  f32 additive attention bias
    hsel = hsel_ref[...]    # (C, D)  f32 head-selection mask
    bsum = bsum_ref[...]    # (C, C)  f32 per-head-block column summer

    ln1_a = vecs_ref[V_LN1_A:V_LN1_A + 1, 0:D]
    ln1_b = vecs_ref[V_LN1_B:V_LN1_B + 1, 0:D]
    ln2_a = vecs_ref[V_LN2_A:V_LN2_A + 1, 0:D]
    ln2_b = vecs_ref[V_LN2_B:V_LN2_B + 1, 0:D]
    bo    = vecs_ref[V_BO:V_BO + 1, 0:D]
    b2    = vecs_ref[V_B2:V_B2 + 1, 0:D]
    b1    = vecs_ref[V_B1:V_B1 + 1, 0:FF]
    bqkv  = vecs_ref[V_BQKV:V_BQKV + 1, :]

    # ---------------- sublayer 0: x + self_attn(norm(x)) ----------------
    xn = _layernorm(x, ln1_a, ln1_b)

    # fused QKV projection; 1/sqrt(DK) already folded into the Q weights/bias
    qkv = jnp.dot(xn.astype(jnp.bfloat16), wqkv_ref[...],
                  preferred_element_type=jnp.float32) + bqkv   # (R, 3D) f32
    q = qkv[:, 0:D]
    k = qkv[:, D:2 * D]
    v = qkv[:, 2 * D:3 * D]

    # Block-structured all-head / all-batch attention.
    # Score column index c = h*(B*S) + b'*S + s'.  K/V replicated along
    # sublanes once per head, head-masked by a precomputed float mask.
    k_bd = jnp.concatenate([k] * H, axis=0) * hsel             # (C, D) f32
    v_bd = jnp.concatenate([v] * H, axis=0) * hsel             # (C, D) f32

    scores = lax.dot_general(q.astype(jnp.bfloat16), k_bd.astype(jnp.bfloat16),
                             (((1,), (1,)), ((), ())),
                             preferred_element_type=jnp.float32) + bias  # (R, C)

    # softmax per (head, batch) block of key columns.  Global row max is a
    # valid stabilizer here (cross-batch entries are -1e30 -> exp == 0, so
    # the per-head-block sum equals the own-batch denominator).
    p = jnp.exp(scores - jnp.max(scores, axis=-1, keepdims=True))        # (R, C)
    denom = jnp.dot(p, bsum, preferred_element_type=jnp.float32)         # (R, C)
    p = p * pl.reciprocal(denom, approx=True)

    # heads come out already concatenated along D
    ctx = jnp.dot(p.astype(jnp.bfloat16), v_bd.astype(jnp.bfloat16),
                  preferred_element_type=jnp.float32)                    # (R, D)
    attn = jnp.dot(ctx.astype(jnp.bfloat16), wo_ref[...],
                   preferred_element_type=jnp.float32) + bo
    # TODO(synk): dropout omitted (identity in eval mode)
    x1 = x + attn

    # ---------------- sublayer 1: x1 + feed_forward(norm(x1)) ----------------
    xn2 = _layernorm(x1, ln2_a, ln2_b)
    hdn = jnp.dot(xn2.astype(jnp.bfloat16), w1_ref[...],
                  preferred_element_type=jnp.float32) + b1
    hdn = jnp.maximum(hdn, 0.0)                                          # ReLU
    ff = jnp.dot(hdn.astype(jnp.bfloat16), w2_ref[...],
                 preferred_element_type=jnp.float32) + b2

    out_ref[...] = x1 + ff


def make_attention_bias(mask):
    """Additive bias (R, C): 0 visible, -1e9 masked, -1e30 cross-batch."""
    m2 = mask.reshape(R, S)                                   # (b,s) rows, s' cols
    r_idx = jnp.arange(R)
    c_idx = jnp.arange(C)
    same_batch = (r_idx[:, None] // S) == ((c_idx[None, :] % R) // S)   # (R, C)
    vis = jnp.tile(m2, (1, H * B)) > 0                        # column c -> s' = c % S
    return jnp.where(same_batch,
                     jnp.where(vis, 0.0, NEG_MASK),
                     NEG_BLOCK).astype(jnp.float32)


def encoder_layer(x, mask, params):
    """x: (B, S, D) f32, mask: (B, S, S) with 1 = keep."""
    wqkv, wo, w1, w2, vecs, head_sel, blk_sum = params
    b, s, d = x.shape
    attn_bias = make_attention_bias(mask)

    n_in = 9
    out2d = pl.pallas_call(
        encoder_layer_kernel,
        out_shape=jax.ShapeDtypeStruct((b * s, d), jnp.float32),
        in_specs=[pl.BlockSpec(memory_space=pltpu.MemorySpace.VMEM)
                  for _ in range(n_in)],
        out_specs=pl.BlockSpec(memory_space=pltpu.MemorySpace.VMEM),
    )(x.reshape(b * s, d), attn_bias, head_sel, blk_sum,
      wqkv, wo, w1, w2, vecs)
    return out2d.reshape(b, s, d)


def make_params(key):
    ks = jax.random.split(key, 6)
    wscale = 0.1
    qk_scale = 1.0 / math.sqrt(DK)     # folded into Wq / bq

    wq = wscale * jax.random.normal(ks[0], (D, D), jnp.float32) * qk_scale
    wk = wscale * jax.random.normal(ks[1], (D, D), jnp.float32)
    wv = wscale * jax.random.normal(ks[2], (D, D), jnp.float32)
    wo = wscale * jax.random.normal(ks[3], (D, D), jnp.float32)
    w1 = wscale * jax.random.normal(ks[4], (D, FF), jnp.float32)
    w2 = wscale * jax.random.normal(ks[5], (FF, D), jnp.float32)

    # MXU operands stored in bf16 (accumulation stays f32 in-kernel)
    wqkv = jnp.concatenate([wq, wk, wv], axis=1).astype(jnp.bfloat16)   # (D, 3D)
    wo = wo.astype(jnp.bfloat16)
    w1 = w1.astype(jnp.bfloat16)
    w2 = w2.astype(jnp.bfloat16)

    def row(vec):
        vec = jnp.asarray(vec, jnp.float32).reshape(1, -1)
        return jnp.pad(vec, ((0, 0), (0, 3 * D - vec.shape[1])))

    bq = jnp.zeros((D,)) * qk_scale    # Q bias carries the folded scale
    bk = jnp.zeros((D,))
    bv = jnp.zeros((D,))
    vecs = jnp.concatenate([
        row(jnp.ones((D,))),                         # V_LN1_A
        row(jnp.zeros((D,))),                        # V_LN1_B
        row(jnp.ones((D,))),                         # V_LN2_A
        row(jnp.zeros((D,))),                        # V_LN2_B
        row(jnp.zeros((D,))),                        # V_BO
        row(jnp.zeros((D,))),                        # V_B2
        row(jnp.zeros((FF,))),                       # V_B1
        row(jnp.concatenate([bq, bk, bv])),          # V_BQKV
    ], axis=0)                                       # (8, 3D) f32

    # constant selection matrices (precomputed -> zero in-kernel VPU cost)
    head_sel = ((jnp.arange(C)[:, None] // R) ==
                (jnp.arange(D)[None, :] // DK)).astype(jnp.float32)     # (C, D)
    blk_sum = ((jnp.arange(C)[:, None] // R) ==
               (jnp.arange(C)[None, :] // R)).astype(jnp.float32)       # (C, C)

    return [wqkv, wo, w1, w2, vecs, head_sel, blk_sum]


if __name__ == "__main__":
    key = jax.random.PRNGKey(0)
    kx, kp = jax.random.split(key)
    x = jax.random.normal(kx, (B, S, D), jnp.float32)
    mask = jnp.ones((B, S, S), jnp.float32)   # all positions visible
    params = make_params(kp)

    out = encoder_layer(x, mask, params)
    jax.block_until_ready(out)
    assert out.shape == (B, S, D)
    assert bool(jnp.all(jnp.isfinite(out)))
    print("KERNEL_OK")
</pallas_src>

<mosaic_0001>
module attributes {stable_mosaic.version = 11 : i64} {
  func.func @encoder_layer_kernel(%arg0: memref<16x32xf32, #tpu.memory_space<vmem>>, %arg1: memref<16x64xf32, #tpu.memory_space<vmem>>, %arg2: memref<64x32xf32, #tpu.memory_space<vmem>>, %arg3: memref<64x64xf32, #tpu.memory_space<vmem>>, %arg4: memref<32x96xbf16, #tpu.memory_space<vmem>>, %arg5: memref<32x32xbf16, #tpu.memory_space<vmem>>, %arg6: memref<32x64xbf16, #tpu.memory_space<vmem>>, %arg7: memref<64x32xbf16, #tpu.memory_space<vmem>>, %arg8: memref<8x96xf32, #tpu.memory_space<vmem>>, %arg9: memref<16x32xf32, #tpu.memory_space<vmem>>) attributes {dimension_semantics = [], scalar_prefetch = 0 : i64, scratch_operands = 0 : i64, tpu.core_type = #tpu.core_type<tc>} {
    %c0 = arith.constant 0 : index
    %c0_0 = arith.constant 0 : index
    %0 = vector.load %arg0[%c0, %c0_0] : memref<16x32xf32, #tpu.memory_space<vmem>>, vector<16x32xf32>
    %c0_1 = arith.constant 0 : index
    %c0_2 = arith.constant 0 : index
    %1 = vector.load %arg1[%c0_1, %c0_2] : memref<16x64xf32, #tpu.memory_space<vmem>>, vector<16x64xf32>
    %c0_3 = arith.constant 0 : index
    %c0_4 = arith.constant 0 : index
    %2 = vector.load %arg2[%c0_3, %c0_4] : memref<64x32xf32, #tpu.memory_space<vmem>>, vector<64x32xf32>
    %c0_5 = arith.constant 0 : index
    %c0_6 = arith.constant 0 : index
    %3 = vector.load %arg3[%c0_5, %c0_6] : memref<64x64xf32, #tpu.memory_space<vmem>>, vector<64x64xf32>
    %c0_7 = arith.constant 0 : index
    %c0_8 = arith.constant 0 : index
    %4 = vector.load %arg8[%c0_7, %c0_8] : memref<8x96xf32, #tpu.memory_space<vmem>>, vector<1x32xf32>
    %c1 = arith.constant 1 : index
    %c0_9 = arith.constant 0 : index
    %5 = vector.load %arg8[%c1, %c0_9] : memref<8x96xf32, #tpu.memory_space<vmem>>, vector<1x32xf32>
    %c2 = arith.constant 2 : index
    %c0_10 = arith.constant 0 : index
    %6 = vector.load %arg8[%c2, %c0_10] : memref<8x96xf32, #tpu.memory_space<vmem>>, vector<1x32xf32>
    %c3 = arith.constant 3 : index
    %c0_11 = arith.constant 0 : index
    %7 = vector.load %arg8[%c3, %c0_11] : memref<8x96xf32, #tpu.memory_space<vmem>>, vector<1x32xf32>
    %c4 = arith.constant 4 : index
    %c0_12 = arith.constant 0 : index
    %8 = vector.load %arg8[%c4, %c0_12] : memref<8x96xf32, #tpu.memory_space<vmem>>, vector<1x32xf32>
    %c5 = arith.constant 5 : index
    %c0_13 = arith.constant 0 : index
    %9 = vector.load %arg8[%c5, %c0_13] : memref<8x96xf32, #tpu.memory_space<vmem>>, vector<1x32xf32>
    %c6 = arith.constant 6 : index
    %c0_14 = arith.constant 0 : index
    %10 = vector.load %arg8[%c6, %c0_14] : memref<8x96xf32, #tpu.memory_space<vmem>>, vector<1x64xf32>
    %c7 = arith.constant 7 : index
    %c0_15 = arith.constant 0 : index
    %11 = vector.load %arg8[%c7, %c0_15] : memref<8x96xf32, #tpu.memory_space<vmem>>, vector<1x96xf32>
    %cst = arith.constant dense<0.000000e+00> : vector<16xf32>
    %12 = vector.multi_reduction <add>, %0, %cst [1] : vector<16x32xf32> to vector<16xf32>
    %13 = vector.shape_cast %12 : vector<16xf32> to vector<16x1xf32>
    %cst_16 = arith.constant 3.200000e+01 : f32
    %14 = vector.broadcast %cst_16 : f32 to vector<16x1xf32>
    %15 = arith.divf %13, %14 : vector<16x1xf32>
    %16 = vector.broadcast %15 : vector<16x1xf32> to vector<16x32xf32>
    %17 = arith.subf %0, %16 : vector<16x32xf32>
    %18 = arith.mulf %17, %17 : vector<16x32xf32>
    %cst_17 = arith.constant dense<0.000000e+00> : vector<16xf32>
    %19 = vector.multi_reduction <add>, %18, %cst_17 [1] : vector<16x32xf32> to vector<16xf32>
    %20 = vector.shape_cast %19 : vector<16xf32> to vector<16x1xf32>
    %cst_18 = arith.constant 3.100000e+01 : f32
    %21 = vector.broadcast %cst_18 : f32 to vector<16x1xf32>
    %22 = arith.divf %20, %21 : vector<16x1xf32>
    %23 = math.sqrt %22 : vector<16x1xf32>
    %24 = vector.broadcast %15 : vector<16x1xf32> to vector<16x32xf32>
    %25 = arith.subf %0, %24 : vector<16x32xf32>
    %26 = vector.broadcast %4 : vector<1x32xf32> to vector<16x32xf32>
    %27 = arith.mulf %26, %25 : vector<16x32xf32>
    %cst_19 = arith.constant 9.99999997E-7 : f32
    %28 = vector.broadcast %cst_19 : f32 to vector<16x1xf32>
    %29 = arith.addf %23, %28 : vector<16x1xf32>
    %30 = vector.broadcast %29 : vector<16x1xf32> to vector<16x32xf32>
    %31 = arith.divf %27, %30 : vector<16x32xf32>
    %32 = vector.broadcast %5 : vector<1x32xf32> to vector<16x32xf32>
    %33 = arith.addf %31, %32 : vector<16x32xf32>
    %34 = arith.truncf %33 : vector<16x32xf32> to vector<16x32xbf16>
    %c0_20 = arith.constant 0 : index
    %c0_21 = arith.constant 0 : index
    %35 = vector.load %arg4[%c0_20, %c0_21] : memref<32x96xbf16, #tpu.memory_space<vmem>>, vector<32x96xbf16>
    %cst_22 = arith.constant dense<0.000000e+00> : vector<16x96xf32>
    %36 = tpu.matmul %34, %35, %cst_22 {dimension_numbers = #tpu.dot_dimension_numbers<[1], [0], [0], [1], [0, 0, 1, 1], [], []>} : vector<16x32xbf16>, vector<32x96xbf16>, vector<16x96xf32> -> vector<16x96xf32>
    %37 = vector.broadcast %11 : vector<1x96xf32> to vector<16x96xf32>
    %38 = arith.addf %36, %37 : vector<16x96xf32>
    %39 = vector.extract_strided_slice %38 {offsets = [0, 0], sizes = [16, 32], strides = [1, 1]} : vector<16x96xf32> to vector<16x32xf32>
    %40 = vector.extract_strided_slice %38 {offsets = [0, 32], sizes = [16, 32], strides = [1, 1]} : vector<16x96xf32> to vector<16x32xf32>
    %41 = vector.extract_strided_slice %38 {offsets = [0, 64], sizes = [16, 32], strides = [1, 1]} : vector<16x96xf32> to vector<16x32xf32>
    %42 = tpu.concatenate %40, %40, %40, %40 in 0 : vector<16x32xf32>, vector<16x32xf32>, vector<16x32xf32>, vector<16x32xf32> -> vector<64x32xf32>
    %43 = arith.mulf %42, %2 : vector<64x32xf32>
    %44 = tpu.concatenate %41, %41, %41, %41 in 0 : vector<16x32xf32>, vector<16x32xf32>, vector<16x32xf32>, vector<16x32xf32> -> vector<64x32xf32>
    %45 = arith.mulf %44, %2 : vector<64x32xf32>
    %46 = arith.truncf %39 : vector<16x32xf32> to vector<16x32xbf16>
    %47 = arith.truncf %43 : vector<64x32xf32> to vector<64x32xbf16>
    %cst_23 = arith.constant dense<0.000000e+00> : vector<16x64xf32>
    %48 = tpu.matmul %46, %47, %cst_23 {dimension_numbers = #tpu.dot_dimension_numbers<[1], [1], [0], [0], [0, 0, 1, 0], [], []>} : vector<16x32xbf16>, vector<64x32xbf16>, vector<16x64xf32> -> vector<16x64xf32>
    %49 = arith.addf %48, %1 : vector<16x64xf32>
    %cst_24 = arith.constant dense<0xFF800000> : vector<16xf32>
    %50 = vector.multi_reduction <maximumf>, %49, %cst_24 [1] : vector<16x64xf32> to vector<16xf32>
    %51 = vector.shape_cast %50 : vector<16xf32> to vector<16x1xf32>
    %52 = vector.broadcast %51 : vector<16x1xf32> to vector<16x64xf32>
    %53 = arith.subf %49, %52 : vector<16x64xf32>
    %54 = math.exp %53 : vector<16x64xf32>
    %cst_25 = arith.constant dense<0.000000e+00> : vector<16x64xf32>
    %55 = tpu.matmul %54, %3, %cst_25 {dimension_numbers = #tpu.dot_dimension_numbers<[1], [0], [0], [1], [0, 0, 1, 1], [], []>} : vector<16x64xf32>, vector<64x64xf32>, vector<16x64xf32> -> vector<16x64xf32>
    %56 = tpu.reciprocal %55 {approx = true} : vector<16x64xf32> -> vector<16x64xf32>
    %57 = arith.mulf %54, %56 : vector<16x64xf32>
    %58 = arith.truncf %57 : vector<16x64xf32> to vector<16x64xbf16>
    %59 = arith.truncf %45 : vector<64x32xf32> to vector<64x32xbf16>
    %cst_26 = arith.constant dense<0.000000e+00> : vector<16x32xf32>
    %60 = tpu.matmul %58, %59, %cst_26 {dimension_numbers = #tpu.dot_dimension_numbers<[1], [0], [0], [1], [0, 0, 1, 1], [], []>} : vector<16x64xbf16>, vector<64x32xbf16>, vector<16x32xf32> -> vector<16x32xf32>
    %61 = arith.truncf %60 : vector<16x32xf32> to vector<16x32xbf16>
    %c0_27 = arith.constant 0 : index
    %c0_28 = arith.constant 0 : index
    %62 = vector.load %arg5[%c0_27, %c0_28] : memref<32x32xbf16, #tpu.memory_space<vmem>>, vector<32x32xbf16>
    %cst_29 = arith.constant dense<0.000000e+00> : vector<16x32xf32>
    %63 = tpu.matmul %61, %62, %cst_29 {dimension_numbers = #tpu.dot_dimension_numbers<[1], [0], [0], [1], [0, 0, 1, 1], [], []>} : vector<16x32xbf16>, vector<32x32xbf16>, vector<16x32xf32> -> vector<16x32xf32>
    %64 = vector.broadcast %8 : vector<1x32xf32> to vector<16x32xf32>
    %65 = arith.addf %63, %64 : vector<16x32xf32>
    %66 = arith.addf %0, %65 : vector<16x32xf32>
    %cst_30 = arith.constant dense<0.000000e+00> : vector<16xf32>
    %67 = vector.multi_reduction <add>, %66, %cst_30 [1] : vector<16x32xf32> to vector<16xf32>
    %68 = vector.shape_cast %67 : vector<16xf32> to vector<16x1xf32>
    %cst_31 = arith.constant 3.200000e+01 : f32
    %69 = vector.broadcast %cst_31 : f32 to vector<16x1xf32>
    %70 = arith.divf %68, %69 : vector<16x1xf32>
    %71 = vector.broadcast %70 : vector<16x1xf32> to vector<16x32xf32>
    %72 = arith.subf %66, %71 : vector<16x32xf32>
    %73 = arith.mulf %72, %72 : vector<16x32xf32>
    %cst_32 = arith.constant dense<0.000000e+00> : vector<16xf32>
    %74 = vector.multi_reduction <add>, %73, %cst_32 [1] : vector<16x32xf32> to vector<16xf32>
    %75 = vector.shape_cast %74 : vector<16xf32> to vector<16x1xf32>
    %cst_33 = arith.constant 3.100000e+01 : f32
    %76 = vector.broadcast %cst_33 : f32 to vector<16x1xf32>
    %77 = arith.divf %75, %76 : vector<16x1xf32>
    %78 = math.sqrt %77 : vector<16x1xf32>
    %79 = vector.broadcast %70 : vector<16x1xf32> to vector<16x32xf32>
    %80 = arith.subf %66, %79 : vector<16x32xf32>
    %81 = vector.broadcast %6 : vector<1x32xf32> to vector<16x32xf32>
    %82 = arith.mulf %81, %80 : vector<16x32xf32>
    %cst_34 = arith.constant 9.99999997E-7 : f32
    %83 = vector.broadcast %cst_34 : f32 to vector<16x1xf32>
    %84 = arith.addf %78, %83 : vector<16x1xf32>
    %85 = vector.broadcast %84 : vector<16x1xf32> to vector<16x32xf32>
    %86 = arith.divf %82, %85 : vector<16x32xf32>
    %87 = vector.broadcast %7 : vector<1x32xf32> to vector<16x32xf32>
    %88 = arith.addf %86, %87 : vector<16x32xf32>
    %89 = arith.truncf %88 : vector<16x32xf32> to vector<16x32xbf16>
    %c0_35 = arith.constant 0 : index
    %c0_36 = arith.constant 0 : index
    %90 = vector.load %arg6[%c0_35, %c0_36] : memref<32x64xbf16, #tpu.memory_space<vmem>>, vector<32x64xbf16>
    %cst_37 = arith.constant dense<0.000000e+00> : vector<16x64xf32>
    %91 = tpu.matmul %89, %90, %cst_37 {dimension_numbers = #tpu.dot_dimension_numbers<[1], [0], [0], [1], [0, 0, 1, 1], [], []>} : vector<16x32xbf16>, vector<32x64xbf16>, vector<16x64xf32> -> vector<16x64xf32>
    %92 = vector.broadcast %10 : vector<1x64xf32> to vector<16x64xf32>
    %93 = arith.addf %91, %92 : vector<16x64xf32>
    %cst_38 = arith.constant 0.000000e+00 : f32
    %94 = vector.broadcast %cst_38 : f32 to vector<16x64xf32>
    %95 = arith.maximumf %93, %94 : vector<16x64xf32>
    %96 = arith.truncf %95 : vector<16x64xf32> to vector<16x64xbf16>
    %c0_39 = arith.constant 0 : index
    %c0_40 = arith.constant 0 : index
    %97 = vector.load %arg7[%c0_39, %c0_40] : memref<64x32xbf16, #tpu.memory_space<vmem>>, vector<64x32xbf16>
    %cst_41 = arith.constant dense<0.000000e+00> : vector<16x32xf32>
    %98 = tpu.matmul %96, %97, %cst_41 {dimension_numbers = #tpu.dot_dimension_numbers<[1], [0], [0], [1], [0, 0, 1, 1], [], []>} : vector<16x64xbf16>, vector<64x32xbf16>, vector<16x32xf32> -> vector<16x32xf32>
    %99 = vector.broadcast %9 : vector<1x32xf32> to vector<16x32xf32>
    %100 = arith.addf %98, %99 : vector<16x32xf32>
    %101 = arith.addf %66, %100 : vector<16x32xf32>
    %c0_42 = arith.constant 0 : index
    %c0_43 = arith.constant 0 : index
    %102 = vector.load %arg9[%c0_42, %c0_43] : memref<16x32xf32, #tpu.memory_space<vmem>>, vector<16x32xf32>
    tpu.vector_store %arg9[%c0_42, %c0_43], %101 {strides = array<i32>} : memref<16x32xf32, #tpu.memory_space<vmem>>, vector<16x32xf32>,
    return
  }
}

</mosaic_0001>

<llo_original>
// kernel: tpu_custom_call.1
$region0: #{tpu_custom_call.1}
  #allocation0 [shape = 'u32[]', space=smem, size = 0x4, offset = 0x4, fixed_abs, tag = 'smem constant byte address 0x4 - core index']
  #allocation1 [shape = 'u32[144,128]{1,0:T(1,128)}', space=vmem, size = 0x12000, scoped, tag = 'internal scratch']
  %s0 = inlined_call_operand.vmem [shape: f32[16,32], index: 0, kind: input, shape index: {}]
  %s1 = inlined_call_operand.vmem [shape: f32[16,64], index: 1, kind: input, shape index: {}]
  %s2 = inlined_call_operand.vmem [shape: f32[64,32], index: 2, kind: input, shape index: {}]
  %s3 = inlined_call_operand.vmem [shape: f32[64,64], index: 3, kind: input, shape index: {}]
  %s4 = inlined_call_operand.vmem [shape: bf16[32,96], index: 4, kind: input, shape index: {}]
  %s5 = inlined_call_operand.hbm [shape: bf16[32,32], index: 5, kind: input, shape index: {}]
  %s6 = inlined_call_operand.hbm [shape: bf16[32,64], index: 6, kind: input, shape index: {}]
  %s7 = inlined_call_operand.vmem [shape: bf16[64,32], index: 7, kind: input, shape index: {}]
  %s8 = inlined_call_operand.vmem [shape: f32[8,96], index: 8, kind: input, shape index: {}]
  %s9 = inlined_call_operand.hbm [shape: f32[16,32], index: 9, kind: output, shape index: {}]
  %s10 = sld [smem:[#allocation0]]
  $region54: #{tpu_custom_call.1} parent=0
    _
  %s12 = ssub.s32 1, %s10
  %s13 = scalar_select 0, %s12, %s10
  $region1: #{tpu_custom_call.1} parent=0
    #allocation2 [shape = 'u8[8192]{0}', space=vmem, size = 0x2000, scoped, tag = 'input window, operand 5, single buffered']
    #allocation3 [shape = 's32[1]{0}', space=sflag, size = 0x4, scoped, tag = 'scoped memory for tpu_custom_call.1']
    #allocation4 [shape = 's32[1]{0}', space=sflag, size = 0x4, scoped, tag = 'scoped memory for tpu_custom_call.1']
    #allocation5 [shape = 'u8[8192]{0}', space=vmem, size = 0x2000, scoped, tag = 'input window, operand 6, single buffered']
    #allocation6 [shape = 's32[1]{0}', space=sflag, size = 0x4, scoped, tag = 'scoped memory for tpu_custom_call.1']
    #allocation7 [shape = 'u8[8192]{0}', space=vmem, size = 0x2000, scoped, tag = 'output window, operand 0, single buffered']
    %14 = vsyncpa [#allocation3], 0
    %15 = vsyncpa [#allocation6], 0
    %16 = vsyncpa [#allocation4], 0
    // Predicated region
    $region2: #{tpu_custom_call.1} parent=1 // pred_check
      _
    $region3: #{tpu_custom_call.1} parent=1 // pred_check_branch
      %18 = sbr.rel (0) target = $region5
    $region4: #{tpu_custom_call.1} parent=1 // pred_region
      _
    $region5: #{tpu_custom_call.1} parent=1 // pred_fallthru
      _
    // Predicated region
    $region6: #{tpu_custom_call.1} parent=1 // pred_check
      _
    $region7: #{tpu_custom_call.1} parent=1 // pred_check_branch
      %20 = sbr.rel (0) target = $region9
    $region8: #{tpu_custom_call.1} parent=1 // pred_region
      _
    $region9: #{tpu_custom_call.1} parent=1 // pred_fallthru
      _
    // Predicated region
    $region10: #{tpu_custom_call.1} parent=1 // pred_check
      _
    $region11: #{tpu_custom_call.1} parent=1 // pred_check_branch
      %22 = sbr.rel (0) target = $region13
    $region12: #{tpu_custom_call.1} parent=1 // pred_region
      _
    $region13: #{tpu_custom_call.1} parent=1 // pred_fallthru
      _
    // Predicated region
    $region14: #{tpu_custom_call.1} parent=1 // pred_check
      _
    $region15: #{tpu_custom_call.1} parent=1 // pred_check_branch
      %24 = sbr.rel (0) target = $region17
    $region16: #{tpu_custom_call.1} parent=1 // pred_region
      _
    $region17: #{tpu_custom_call.1} parent=1 // pred_fallthru
      _
    // Predicated region
    $region18: #{tpu_custom_call.1} parent=1 // pred_check
      _
    $region19: #{tpu_custom_call.1} parent=1 // pred_check_branch
      %26 = sbr.rel (0) target = $region21
    $region20: #{tpu_custom_call.1} parent=1 // pred_region
      _
    $region21: #{tpu_custom_call.1} parent=1 // pred_fallthru
      _
    // Predicated region
    $region22: #{tpu_custom_call.1} parent=1 // pred_check
      _
    $region23: #{tpu_custom_call.1} parent=1 // pred_check_branch
      %28 = sbr.rel (0) target = $region25
    $region24: #{tpu_custom_call.1} parent=1 // pred_region
      %s30 = ssub.s32 256, 256
      %31 = vsyncadd [#allocation3], %s30
      %s32 = sshll.u32 [#allocation2], 4
      %s33 = int_to_ptr.vmem [resolvable:$true] %s32
      %38 = dma.hbm_to_vmem [thread:$0]  %s5, 256, %s33, [#allocation3], 64, 64, 4
    $region25: #{tpu_custom_call.1} parent=1 // pred_fallthru
      _
    // Predicated region
    $region26: #{tpu_custom_call.1} parent=1 // pred_check
      _
    $region27: #{tpu_custom_call.1} parent=1 // pred_check_branch
      %40 = sbr.rel (0) target = $region29
    $region28: #{tpu_custom_call.1} parent=1 // pred_region
      %s42 = ssub.s32 256, 256
      %43 = vsyncadd [#allocation6], %s42
      %s44 = sshll.u32 [#allocation5], 4
      %s45 = int_to_ptr.vmem [resolvable:$true] %s44
      %50 = dma.hbm_to_vmem [thread:$0]  %s6, 256, %s45, [#allocation6], 64, 64, 4
    $region29: #{tpu_custom_call.1} parent=1 // pred_fallthru
      _
    // Predicated region
    $region30: #{tpu_custom_call.1} parent=1 // pred_check
      _
    $region31: #{tpu_custom_call.1} parent=1 // pred_check_branch
      %52 = sbr.rel (0) target = $region33
    $region32: #{tpu_custom_call.1} parent=1 // pred_region
      _
    $region33: #{tpu_custom_call.1} parent=1 // pred_fallthru
      _
    // Predicated region
    $region34: #{tpu_custom_call.1} parent=1 // pred_check
      _
    $region35: #{tpu_custom_call.1} parent=1 // pred_check_branch
      %54 = sbr.rel (0) target = $region37
    $region36: #{tpu_custom_call.1} parent=1 // pred_region
      _
    $region37: #{tpu_custom_call.1} parent=1 // pred_fallthru
      _
    // Predicated region
    $region38: #{tpu_custom_call.1} parent=1 // pred_check
      _
    $region39: #{tpu_custom_call.1} parent=1 // pred_check_branch
      %56 = sbr.rel (0) target = $region41
    $region40: #{tpu_custom_call.1} parent=1 // pred_region
      %57 = dma.done [#allocation3], 256
    $region41: #{tpu_custom_call.1} parent=1 // pred_fallthru
      _
    // Predicated region
    $region42: #{tpu_custom_call.1} parent=1 // pred_check
      _
    $region43: #{tpu_custom_call.1} parent=1 // pred_check_branch
      %59 = sbr.rel (0) target = $region45
    $region44: #{tpu_custom_call.1} parent=1 // pred_region
      %60 = dma.done [#allocation6], 256
    $region45: #{tpu_custom_call.1} parent=1 // pred_fallthru
      _
    %v62 = vld [vmem:[%s0] sm:$0xff]
    %v63 = vld [vmem:[%s0 + $0x8] sm:$0xff]
    %v64 = vld [vmem:[%s1] sm:$0xff]
    %v65 = vld [vmem:[%s1 + $0x8] sm:$0xff]
    %v66 = vld [vmem:[%s2] sm:$0xff]
    %v67 = vld [vmem:[%s2 + $0x8] sm:$0xff]
    %v68 = vld [vmem:[%s2 + $0x10] sm:$0xff]
    %v69 = vld [vmem:[%s2 + $0x18] sm:$0xff]
    %v70 = vld [vmem:[%s2 + $0x20] sm:$0xff]
    %v71 = vld [vmem:[%s2 + $0x28] sm:$0xff]
    %v72 = vld [vmem:[%s2 + $0x30] sm:$0xff]
    %v73 = vld [vmem:[%s2 + $0x38] sm:$0xff]
    %v74 = vld [vmem:[%s3] sm:$0xff]
    %v75 = vld [vmem:[%s3 + $0x8] sm:$0xff]
    %v76 = vld [vmem:[%s3 + $0x10] sm:$0xff]
    %v77 = vld [vmem:[%s3 + $0x18] sm:$0xff]
    %v78 = vld [vmem:[%s3 + $0x20] sm:$0xff]
    %v79 = vld [vmem:[%s3 + $0x28] sm:$0xff]
    %v80 = vld [vmem:[%s3 + $0x30] sm:$0xff]
    %v81 = vld [vmem:[%s3 + $0x38] sm:$0xff]
    %v82 = vld [vmem:[%s8] sm:$0x1]
    %v83 = vld [vmem:[%s8 + $0x1] sm:$0x1]
    %v84 = vld [vmem:[%s8 + $0x2] sm:$0x1]
    %v85 = vld [vmem:[%s8 + $0x3] sm:$0x1]
    %v86 = vld [vmem:[%s8 + $0x4] sm:$0x1]
    %v87 = vld [vmem:[%s8 + $0x5] sm:$0x1]
    %v88 = vld [vmem:[%s8 + $0x6] sm:$0x1]
    %v89 = vld [vmem:[%s8 + $0x7] sm:$0x1]
    %vm90 = vcmask 261120
    %v91 = vsel %vm90, %v62, 0.0
    %92 = vadd.xlane.f32.xlu0 %v91
    %v93 = vpop.xlane.xlu0 %92
    %v94 = vsel %vm90, %v63, 0.0
    %95 = vadd.xlane.f32.xlu0 %v94
    %v96 = vpop.xlane.xlu0 %95
    %v97 = vrcp.pop 32.0
    %v98 = vmul.f32 %v93, %v97
    %v99 = vmul.f32 %v96, %v97
    %v100 = vsub.f32 %v62, %v98
    %v101 = vsub.f32 %v63, %v99
    %v102 = vmul.f32 %v100, %v100
    %v103 = vmul.f32 %v101, %v101
    %v104 = vsel %vm90, %v102, 0.0
    %105 = vadd.xlane.f32.xlu0 %v104
    %v106 = vpop.xlane.xlu0 %105
    %v107 = vsel %vm90, %v103, 0.0
    %108 = vadd.xlane.f32.xlu0 %v107
    %v109 = vpop.xlane.xlu0 %108
    %v110 = vrcp.pop 31.0
    %v111 = vmul.f32 %v106, %v110
    %v112 = vmul.f32 %v109, %v110
    %v113 = vrsqrt.pop %v111
    %v114 = vmul.f32 %v111, %v113
    %vm115 = vcmp.eq.f32.partialorder %v111, inf
    %v116 = vsel %vm115, %v111, %v114
    %vm117 = vcmp.eq.f32.partialorder %v111, 0.0
    %v118 = vand.u32 %v111, 2147483648
    %v119 = vsel %vm117, %v118, %v116
    %v120 = vrsqrt.pop %v112
    %v121 = vmul.f32 %v112, %v120
    %vm122 = vcmp.eq.f32.partialorder %v112, inf
    %v123 = vsel %vm122, %v112, %v121
    %vm124 = vcmp.eq.f32.partialorder %v112, 0.0
    %v125 = vand.u32 %v112, 2147483648
    %v126 = vsel %vm124, %v125, %v123
    %v127 = vlaneseq
    %v128 = vshrl.u32 %v127, 7
    %v129 = vsub.s32 0, %v128
    %v130 = vrot.slane %v82, %v129
    %v131 = vmul.f32 %v130, %v100
    %v132 = vmul.f32 %v130, %v101
    %v133 = vadd.f32 %v119, 1e-06
    %v134 = vadd.f32 %v126, 1e-06
    %v135 = vrcp.pop %v133
    %v136 = vmul.f32 %v131, %v135
    %v137 = vrcp.pop %v134
    %v138 = vmul.f32 %v132, %v137
    %v139 = vlaneseq
    %v140 = vshrl.u32 %v139, 7
    %v141 = vsub.s32 0, %v140
    %v142 = vrot.slane %v83, %v141
    %v143 = vadd.f32 %v136, %v142
    %v144 = vadd.f32 %v138, %v142
    %v145 = vpack.c.bf16 %v144, %v143
    %v146 = vld [vmem:[%s4] sm:$0xf]
    %v147 = vld [vmem:[%s4 + $0x4] sm:$0xf]
    %v148 = vld [vmem:[%s4 + $0x8] sm:$0xf]
    %v149 = vld [vmem:[%s4 + $0xc] sm:$0xf]
    %v150 = vlaneseq
    %v151 = vshrl.u32 %v150, 7
    %v152 = vsub.s32 0, %v151
    %v153 = vrot.slane %v89, %v152
    %v158 = vunpack.c.l.b16 %v146
    %v159 = vunpack.c.l.b16 %v147
    %v160 = vunpack.c.l.b16 %v148
    %v161 = vunpack.c.l.b16 %v149
    %v162 = vpack.c.b16 %v159, %v158
    %v163 = vpack.c.b16 %v161, %v160
    %v167 = vsel %vm90, %v145, 0
    %169 = vmatprep.subr.bf16.mxu0 0
    %170 = vmatpush1.bf16.msra.mxu0 %v162
    %171 = vmatprep.subr.bf16.mxu0 0
    %172 = vmatpush1.bf16.msra.mxu0 %v163
    %173 = vmatprep.subr.bf16.mxu0 0
    %174 = vmatpush1.bf16.msra.mxu0 0
    %175 = vmatprep.subr.bf16.mxu0 0
    %176 = vmatpush1.bf16.msra.mxu0 0
    %177 = vmatprep.subr.bf16.mxu0 0
    %178 = vmatpush1.bf16.msra.mxu0 0
    %179 = vmatprep.subr.bf16.mxu0 0
    %180 = vmatpush1.bf16.msra.mxu0 0
    %181 = vmatprep.subr.bf16.mxu0 0
    %182 = vmatpush1.bf16.msra.mxu0 0
    %183 = vmatprep.subr.bf16.mxu0 0
    %184 = vmatpush1.bf16.msra.mxu0 0
    %185 = vmatprep.subr.bf16.mxu0 0
    %186 = vmatpush1.bf16.msra.mxu0 0
    %187 = vmatprep.subr.bf16.mxu0 0
    %188 = vmatpush1.bf16.msra.mxu0 0
    %189 = vmatprep.subr.bf16.mxu0 0
    %190 = vmatpush1.bf16.msra.mxu0 0
    %191 = vmatprep.subr.bf16.mxu0 0
    %192 = vmatpush1.bf16.msra.mxu0 0
    %193 = vmatprep.subr.bf16.mxu0 0
    %194 = vmatpush1.bf16.msra.mxu0 0
    %195 = vmatprep.subr.bf16.mxu0 0
    %196 = vmatpush1.bf16.msra.mxu0 0
    %197 = vmatprep.subr.bf16.mxu0 0
    %198 = vmatpush1.bf16.msra.mxu0 0
    %199 = vmatprep.subr.bf16.mxu0 0
    %200 = vmatpush1.bf16.msra.mxu0 0
    %201 = vmatprep.mubr.bf16.mxu0 0
    %202 = vmatmul.mubr.bf16.gmra.mrb[0].mxu0 %v167
    %v203 = vpop.f32.mrb[0].mxu0
    %v204 = vadd.f32 %v153, %v203
    %v205 = vpop.f32.mrb[0].mxu0
    %v206 = vpop.f32.mrb[0].mxu0
    %v207 = vadd.f32 %v153, %v206
    %v208 = vpop.f32.mrb[0].mxu0
    %209 = vdwg.mxu0
    %218 = vrot.lane.b32.xlu0 %v66, 32
    %v219 = vpop.permute.xlu0 %218
    %220 = vrot.lane.b32.xlu0 %v67, 32
    %v221 = vpop.permute.xlu0 %220
    %222 = vrot.lane.b32.xlu0 %v68, 32
    %v223 = vpop.permute.xlu0 %222
    %224 = vrot.lane.b32.xlu0 %v69, 32
    %v225 = vpop.permute.xlu0 %224
    %226 = vrot.lane.b32.xlu0 %v70, 32
    %v227 = vpop.permute.xlu0 %226
    %228 = vrot.lane.b32.xlu0 %v71, 32
    %v229 = vpop.permute.xlu0 %228
    %230 = vrot.lane.b32.xlu0 %v72, 32
    %v231 = vpop.permute.xlu0 %230
    %232 = vrot.lane.b32.xlu0 %v73, 32
    %v233 = vpop.permute.xlu0 %232
    %v242 = vmul.f32 %v204, %v219
    %v243 = vmul.f32 %v207, %v221
    %v244 = vmul.f32 %v204, %v223
    %v245 = vmul.f32 %v207, %v225
    %v246 = vmul.f32 %v204, %v227
    %v247 = vmul.f32 %v207, %v229
    %v248 = vmul.f32 %v204, %v231
    %v249 = vmul.f32 %v207, %v233
    %250 = vrot.lane.b32.xlu0 %v66, 64
    %v251 = vpop.permute.xlu0 %250
    %252 = vrot.lane.b32.xlu0 %v67, 64
    %v253 = vpop.permute.xlu0 %252
    %254 = vrot.lane.b32.xlu0 %v68, 64
    %v255 = vpop.permute.xlu0 %254
    %256 = vrot.lane.b32.xlu0 %v69, 64
    %v257 = vpop.permute.xlu0 %256
    %258 = vrot.lane.b32.xlu0 %v70, 64
    %v259 = vpop.permute.xlu0 %258
    %260 = vrot.lane.b32.xlu0 %v71, 64
    %v261 = vpop.permute.xlu0 %260
    %262 = vrot.lane.b32.xlu0 %v72, 64
    %v263 = vpop.permute.xlu0 %262
    %264 = vrot.lane.b32.xlu0 %v73, 64
    %v265 = vpop.permute.xlu0 %264
    %v274 = vmul.f32 %v204, %v251
    %v275 = vmul.f32 %v207, %v253
    %v276 = vmul.f32 %v204, %v255
    %v277 = vmul.f32 %v207, %v257
    %v278 = vmul.f32 %v204, %v259
    %v279 = vmul.f32 %v207, %v261
    %v280 = vmul.f32 %v204, %v263
    %v281 = vmul.f32 %v207, %v265
    %v282 = vpack.c.bf16 %v207, %v204
    %v283 = vpack.c.bf16 %v243, %v242
    %v284 = vpack.c.bf16 %v245, %v244
    %v285 = vpack.c.bf16 %v247, %v246
    %v286 = vpack.c.bf16 %v249, %v248
    %291 = vrot.lane.b32.xlu0 %v283, 96
    %v292 = vpop.permute.xlu0 %291
    %293 = vrot.lane.b32.xlu0 %v284, 96
    %v294 = vpop.permute.xlu0 %293
    %295 = vrot.lane.b32.xlu0 %v285, 96
    %v296 = vpop.permute.xlu0 %295
    %297 = vrot.lane.b32.xlu0 %v286, 96
    %v298 = vpop.permute.xlu0 %297
    %v300 = vsel %vm90, %v282, 0
    %v303 = vsel %vm90, %v292, 0
    %v306 = vsel %vm90, %v294, 0
    %v309 = vsel %vm90, %v296, 0
    %v312 = vsel %vm90, %v298, 0
    %314 = vmatprep.subr.bf16.mxu0 0
    %315 = vmatpush1.bf16.xpose.msra.mxu0 %v303
    %316 = vmatprep.subr.bf16.mxu0 0
    %317 = vmatpush1.bf16.xpose.msra.mxu0 %v306
    %318 = vmatprep.subr.bf16.mxu0 0
    %319 = vmatpush1.bf16.xpose.msra.mxu0 %v309
    %320 = vmatprep.subr.bf16.mxu0 0
    %321 = vmatpush1.bf16.xpose.msra.mxu0 %v312
    %322 = vmatprep.subr.bf16.mxu0 0
    %323 = vmatpush1.bf16.xpose.msra.mxu0 0
    %324 = vmatprep.subr.bf16.mxu0 0
    %325 = vmatpush1.bf16.xpose.msra.mxu0 0
    %326 = vmatprep.subr.bf16.mxu0 0
    %327 = vmatpush1.bf16.xpose.msra.mxu0 0
    %328 = vmatprep.subr.bf16.mxu0 0
    %329 = vmatpush1.bf16.xpose.msra.mxu0 0
    %330 = vmatprep.subr.bf16.mxu0 0
    %331 = vmatpush1.bf16.xpose.msra.mxu0 0
    %332 = vmatprep.subr.bf16.mxu0 0
    %333 = vmatpush1.bf16.xpose.msra.mxu0 0
    %334 = vmatprep.subr.bf16.mxu0 0
    %335 = vmatpush1.bf16.xpose.msra.mxu0 0
    %336 = vmatprep.subr.bf16.mxu0 0
    %337 = vmatpush1.bf16.xpose.msra.mxu0 0
    %338 = vmatprep.subr.bf16.mxu0 0
    %339 = vmatpush1.bf16.xpose.msra.mxu0 0
    %340 = vmatprep.subr.bf16.mxu0 0
    %341 = vmatpush1.bf16.xpose.msra.mxu0 0
    %342 = vmatprep.subr.bf16.mxu0 0
    %343 = vmatpush1.bf16.xpose.msra.mxu0 0
    %344 = vmatprep.subr.bf16.mxu0 0
    %345 = vmatpush1.bf16.xpose.msra.mxu0 0
    %346 = vmatprep.mubr.bf16.mxu0 0
    %347 = vmatmul.mubr.bf16.gmra.mrb[0].mxu0 %v300
    %v348 = vpop.f32.mrb[0].mxu0
    %v349 = vadd.f32 %v64, %v348
    %v350 = vpop.f32.mrb[0].mxu0
    %v351 = vpop.f32.mrb[0].mxu0
    %v352 = vadd.f32 %v65, %v351
    %v353 = vpop.f32.mrb[0].mxu0
    %354 = vdwg.mxu0
    %vm355 = vcmask 523264
    %v356 = vsel %vm355, %v349, -inf
    %357 = vmax.xlane.f32.xlu0 %v356
    %v358 = vpop.xlane.xlu0 %357
    %v359 = vsel %vm355, %v352, -inf
    %360 = vmax.xlane.f32.xlu0 %v359
    %v361 = vpop.xlane.xlu0 %360
    %v362 = vsub.f32 %v349, %v358
    %v363 = vsub.f32 %v352, %v361
    %v364 = vmul.f32 %v362, 1.442695
    %v365 = vpow.pop %v364
    %v366 = vmul.f32 %v363, 1.442695
    %v367 = vpow.pop %v366
    %v369 = vsel %vm355, %v365, 0
    %v372 = vsel %vm355, %v367, 0
    %374 = vmatprep.subr.mxu0 0.0
    %375 = vmatpush1.msra.mxu0 %v74
    %376 = vmatprep.subr.mxu0 0.0
    %377 = vmatpush1.msra.mxu0 %v75
    %378 = vmatprep.subr.mxu0 0.0
    %379 = vmatpush1.msra.mxu0 %v76
    %380 = vmatprep.subr.mxu0 0.0
    %381 = vmatpush1.msra.mxu0 %v77
    %382 = vmatprep.subr.mxu0 0.0
    %383 = vmatpush1.msra.mxu0 %v78
    %384 = vmatprep.subr.mxu0 0.0
    %385 = vmatpush1.msra.mxu0 %v79
    %386 = vmatprep.subr.mxu0 0.0
    %387 = vmatpush1.msra.mxu0 %v80
    %388 = vmatprep.subr.mxu0 0.0
    %389 = vmatpush1.msra.mxu0 %v81
    %390 = vmatprep.subr.mxu0 0.0
    %391 = vmatpush1.msra.mxu0 0.0
    %392 = vmatprep.subr.mxu0 0.0
    %393 = vmatpush1.msra.mxu0 0.0
    %394 = vmatprep.subr.mxu0 0.0
    %395 = vmatpush1.msra.mxu0 0.0
    %396 = vmatprep.subr.mxu0 0.0
    %397 = vmatpush1.msra.mxu0 0.0
    %398 = vmatprep.subr.mxu0 0.0
    %399 = vmatpush1.msra.mxu0 0.0
    %400 = vmatprep.subr.mxu0 0.0
    %401 = vmatpush1.msra.mxu0 0.0
    %402 = vmatprep.subr.mxu0 0.0
    %403 = vmatpush1.msra.mxu0 0.0
    %404 = vmatprep.subr.mxu0 0.0
    %405 = vmatpush1.msra.mxu0 0.0
    %406 = vmatprep.subr.mxu0 0.0
    %407 = vmatpush1.msra.mxu0 0.0
    %408 = vmatprep.subr.mxu0 0.0
    %409 = vmatpush1.msra.mxu0 0.0
    %410 = vmatprep.subr.mxu0 0.0
    %411 = vmatpush1.msra.mxu0 0.0
    %412 = vmatprep.subr.mxu0 0.0
    %413 = vmatpush1.msra.mxu0 0.0
    %414 = vmatprep.subr.mxu0 0.0
    %415 = vmatpush1.msra.mxu0 0.0
    %416 = vmatprep.subr.mxu0 0.0
    %417 = vmatpush1.msra.mxu0 0.0
    %418 = vmatprep.subr.mxu0 0.0
    %419 = vmatpush1.msra.mxu0 0.0
    %420 = vmatprep.subr.mxu0 0.0
    %421 = vmatpush1.msra.mxu0 0.0
    %422 = vmatprep.subr.mxu0 0.0
    %423 = vmatpush1.msra.mxu0 0.0
    %424 = vmatprep.subr.mxu0 0.0
    %425 = vmatpush1.msra.mxu0 0.0
    %426 = vmatprep.subr.mxu0 0.0
    %427 = vmatpush1.msra.mxu0 0.0
    %428 = vmatprep.subr.mxu0 0.0
    %429 = vmatpush1.msra.mxu0 0.0
    %430 = vmatprep.subr.mxu0 0.0
    %431 = vmatpush1.msra.mxu0 0.0
    %432 = vmatprep.subr.mxu0 0.0
    %433 = vmatpush1.msra.mxu0 0.0
    %434 = vmatprep.subr.mxu0 0.0
    %435 = vmatpush1.msra.mxu0 0.0
    %436 = vmatprep.subr.mxu0 0.0
    %437 = vmatpush1.msra.mxu0 0.0
    %438 = vmatprep.mubr.f32.mxu0 0.0
    %439 = vmatmul.mubr.f32.gmra.mrb[0].mxu0 %v369
    %v440 = vpop.f32.mrb[0].mxu0
    %v441 = vadd.f32 0.0, %v440
    %v442 = vpop.f32.mrb[0].mxu0
    %443 = vmatprep.mubr.f32.mxu0 0.0
    %444 = vmatmul.mubr.f32.gmra.mrb[0].mxu0 %v372
    %v445 = vpop.f32.mrb[0].mxu0
    %v446 = vadd.f32 0.0, %v445
    %v447 = vpop.f32.mrb[0].mxu0
    %448 = vdwg.mxu0
    %v449 = vrcp.pop %v441
    %v450 = vrcp.pop %v446
    %v451 = vmul.f32 %v365, %v449
    %v452 = vmul.f32 %v367, %v450
    %v453 = vpack.c.bf16 %v452, %v451
    %v454 = vpack.c.bf16 %v275, %v274
    %v455 = vpack.c.bf16 %v277, %v276
    %v456 = vpack.c.bf16 %v279, %v278
    %v457 = vpack.c.bf16 %v281, %v280
    %462 = vrot.lane.b32.xlu0 %v454, 64
    %v463 = vpop.permute.xlu0 %462
    %464 = vrot.lane.b32.xlu0 %v455, 64
    %v465 = vpop.permute.xlu0 %464
    %466 = vrot.lane.b32.xlu0 %v456, 64
    %v467 = vpop.permute.xlu0 %466
    %468 = vrot.lane.b32.xlu0 %v457, 64
    %v469 = vpop.permute.xlu0 %468
    %v475 = vsel %vm355, %v453, 0
    %477 = vmatprep.subr.bf16.mxu0 0
    %478 = vmatpush1.bf16.msra.mxu0 %v463
    %479 = vmatprep.subr.bf16.mxu0 0
    %480 = vmatpush1.bf16.msra.mxu0 %v465
    %481 = vmatprep.subr.bf16.mxu0 0
    %482 = vmatpush1.bf16.msra.mxu0 %v467
    %483 = vmatprep.subr.bf16.mxu0 0
    %484 = vmatpush1.bf16.msra.mxu0 %v469
    %485 = vmatprep.subr.bf16.mxu0 0
    %486 = vmatpush1.bf16.msra.mxu0 0
    %487 = vmatprep.subr.bf16.mxu0 0
    %488 = vmatpush1.bf16.msra.mxu0 0
    %489 = vmatprep.subr.bf16.mxu0 0
    %490 = vmatpush1.bf16.msra.mxu0 0
    %491 = vmatprep.subr.bf16.mxu0 0
    %492 = vmatpush1.bf16.msra.mxu0 0
    %493 = vmatprep.subr.bf16.mxu0 0
    %494 = vmatpush1.bf16.msra.mxu0 0
    %495 = vmatprep.subr.bf16.mxu0 0
    %496 = vmatpush1.bf16.msra.mxu0 0
    %497 = vmatprep.subr.bf16.mxu0 0
    %498 = vmatpush1.bf16.msra.mxu0 0
    %499 = vmatprep.subr.bf16.mxu0 0
    %500 = vmatpush1.bf16.msra.mxu0 0
    %501 = vmatprep.subr.bf16.mxu0 0
    %502 = vmatpush1.bf16.msra.mxu0 0
    %503 = vmatprep.subr.bf16.mxu0 0
    %504 = vmatpush1.bf16.msra.mxu0 0
    %505 = vmatprep.subr.bf16.mxu0 0
    %506 = vmatpush1.bf16.msra.mxu0 0
    %507 = vmatprep.subr.bf16.mxu0 0
    %508 = vmatpush1.bf16.msra.mxu0 0
    %509 = vmatprep.mubr.bf16.mxu0 0
    %510 = vmatmul.mubr.bf16.gmra.mrb[0].mxu0 %v475
    %v511 = vpop.f32.mrb[0].mxu0
    %v512 = vadd.f32 0.0, %v511
    %v513 = vpop.f32.mrb[0].mxu0
    %v514 = vpop.f32.mrb[0].mxu0
    %v515 = vadd.f32 0.0, %v514
    %v516 = vpop.f32.mrb[0].mxu0
    %517 = vdwg.mxu0
    %v518 = vpack.c.bf16 %v515, %v512
    %v519 = vld [vmem:[#allocation2] sm:$0xf]
    %v520 = vld [vmem:[#allocation2 + $0x4] sm:$0xf]
    %v521 = vld [vmem:[#allocation2 + $0x8] sm:$0xf]
    %v522 = vld [vmem:[#allocation2 + $0xc] sm:$0xf]
    %v523 = vlaneseq
    %v524 = vshrl.u32 %v523, 7
    %v525 = vsub.s32 0, %v524
    %v526 = vrot.slane %v86, %v525
    %v531 = vunpack.c.l.b16 %v519
    %v532 = vunpack.c.l.b16 %v520
    %v533 = vunpack.c.l.b16 %v521
    %v534 = vunpack.c.l.b16 %v522
    %v535 = vpack.c.b16 %v532, %v531
    %v536 = vpack.c.b16 %v534, %v533
    %v540 = vsel %vm90, %v518, 0
    %542 = vmatprep.subr.bf16.mxu0 0
    %543 = vmatpush1.bf16.msra.mxu0 %v535
    %544 = vmatprep.subr.bf16.mxu0 0
    %545 = vmatpush1.bf16.msra.mxu0 %v536
    %546 = vmatprep.subr.bf16.mxu0 0
    %547 = vmatpush1.bf16.msra.mxu0 0
    %548 = vmatprep.subr.bf16.mxu0 0
    %549 = vmatpush1.bf16.msra.mxu0 0
    %550 = vmatprep.subr.bf16.mxu0 0
    %551 = vmatpush1.bf16.msra.mxu0 0
    %552 = vmatprep.subr.bf16.mxu0 0
    %553 = vmatpush1.bf16.msra.mxu0 0
    %554 = vmatprep.subr.bf16.mxu0 0
    %555 = vmatpush1.bf16.msra.mxu0 0
    %556 = vmatprep.subr.bf16.mxu0 0
    %557 = vmatpush1.bf16.msra.mxu0 0
    %558 = vmatprep.subr.bf16.mxu0 0
    %559 = vmatpush1.bf16.msra.mxu0 0
    %560 = vmatprep.subr.bf16.mxu0 0
    %561 = vmatpush1.bf16.msra.mxu0 0
    %562 = vmatprep.subr.bf16.mxu0 0
    %563 = vmatpush1.bf16.msra.mxu0 0
    %564 = vmatprep.subr.bf16.mxu0 0
    %565 = vmatpush1.bf16.msra.mxu0 0
    %566 = vmatprep.subr.bf16.mxu0 0
    %567 = vmatpush1.bf16.msra.mxu0 0
    %568 = vmatprep.subr.bf16.mxu0 0
    %569 = vmatpush1.bf16.msra.mxu0 0
    %570 = vmatprep.subr.bf16.mxu0 0
    %571 = vmatpush1.bf16.msra.mxu0 0
    %572 = vmatprep.subr.bf16.mxu0 0
    %573 = vmatpush1.bf16.msra.mxu0 0
    %574 = vmatprep.mubr.bf16.mxu0 0
    %575 = vmatmul.mubr.bf16.gmra.mrb[0].mxu0 %v540
    %v576 = vpop.f32.mrb[0].mxu0
    %v577 = vadd.f32 %v526, %v576
    %v578 = vpop.f32.mrb[0].mxu0
    %v579 = vpop.f32.mrb[0].mxu0
    %v580 = vadd.f32 %v526, %v579
    %v581 = vpop.f32.mrb[0].mxu0
    %582 = vdwg.mxu0
    %v583 = vadd.f32 %v62, %v577
    %v584 = vadd.f32 %v63, %v580
    %v585 = vsel %vm90, %v583, 0.0
    %586 = vadd.xlane.f32.xlu0 %v585
    %v587 = vpop.xlane.xlu0 %586
    %v588 = vsel %vm90, %v584, 0.0
    %589 = vadd.xlane.f32.xlu0 %v588
    %v590 = vpop.xlane.xlu0 %589
    %v591 = vmul.f32 %v587, %v97
    %v592 = vmul.f32 %v590, %v97
    %v593 = vsub.f32 %v583, %v591
    %v594 = vsub.f32 %v584, %v592
    %v595 = vmul.f32 %v593, %v593
    %v596 = vmul.f32 %v594, %v594
    %v597 = vsel %vm90, %v595, 0.0
    %598 = vadd.xlane.f32.xlu0 %v597
    %v599 = vpop.xlane.xlu0 %598
    %v600 = vsel %vm90, %v596, 0.0
    %601 = vadd.xlane.f32.xlu0 %v600
    %v602 = vpop.xlane.xlu0 %601
    %v603 = vmul.f32 %v599, %v110
    %v604 = vmul.f32 %v602, %v110
    %v605 = vrsqrt.pop %v603
    %v606 = vmul.f32 %v603, %v605
    %vm607 = vcmp.eq.f32.partialorder %v603, inf
    %v608 = vsel %vm607, %v603, %v606
    %vm609 = vcmp.eq.f32.partialorder %v603, 0.0
    %v610 = vand.u32 %v603, 2147483648
    %v611 = vsel %vm609, %v610, %v608
    %v612 = vrsqrt.pop %v604
    %v613 = vmul.f32 %v604, %v612
    %vm614 = vcmp.eq.f32.partialorder %v604, inf
    %v615 = vsel %vm614, %v604, %v613
    %vm616 = vcmp.eq.f32.partialorder %v604, 0.0
    %v617 = vand.u32 %v604, 2147483648
    %v618 = vsel %vm616, %v617, %v615
    %v619 = vlaneseq
    %v620 = vshrl.u32 %v619, 7
    %v621 = vsub.s32 0, %v620
    %v622 = vrot.slane %v84, %v621
    %v623 = vmul.f32 %v622, %v593
    %v624 = vmul.f32 %v622, %v594
    %v625 = vadd.f32 %v611, 1e-06
    %v626 = vadd.f32 %v618, 1e-06
    %v627 = vrcp.pop %v625
    %v628 = vmul.f32 %v623, %v627
    %v629 = vrcp.pop %v626
    %v630 = vmul.f32 %v624, %v629
    %v631 = vlaneseq
    %v632 = vshrl.u32 %v631, 7
    %v633 = vsub.s32 0, %v632
    %v634 = vrot.slane %v85, %v633
    %v635 = vadd.f32 %v628, %v634
    %v636 = vadd.f32 %v630, %v634
    %v637 = vpack.c.bf16 %v636, %v635
    %v638 = vld [vmem:[#allocation5] sm:$0xf]
    %v639 = vld [vmem:[#allocation5 + $0x4] sm:$0xf]
    %v640 = vld [vmem:[#allocation5 + $0x8] sm:$0xf]
    %v641 = vld [vmem:[#allocation5 + $0xc] sm:$0xf]
    %v642 = vlaneseq
    %v643 = vshrl.u32 %v642, 7
    %v644 = vsub.s32 0, %v643
    %v645 = vrot.slane %v88, %v644
    %v650 = vunpack.c.l.b16 %v638
    %v651 = vunpack.c.l.b16 %v639
    %v652 = vunpack.c.l.b16 %v640
    %v653 = vunpack.c.l.b16 %v641
    %v654 = vpack.c.b16 %v651, %v650
    %v655 = vpack.c.b16 %v653, %v652
    %v659 = vsel %vm90, %v637, 0
    %661 = vmatprep.subr.bf16.mxu0 0
    %662 = vmatpush1.bf16.msra.mxu0 %v654
    %663 = vmatprep.subr.bf16.mxu0 0
    %664 = vmatpush1.bf16.msra.mxu0 %v655
    %665 = vmatprep.subr.bf16.mxu0 0
    %666 = vmatpush1.bf16.msra.mxu0 0
    %667 = vmatprep.subr.bf16.mxu0 0
    %668 = vmatpush1.bf16.msra.mxu0 0
    %669 = vmatprep.subr.bf16.mxu0 0
    %670 = vmatpush1.bf16.msra.mxu0 0
    %671 = vmatprep.subr.bf16.mxu0 0
    %672 = vmatpush1.bf16.msra.mxu0 0
    %673 = vmatprep.subr.bf16.mxu0 0
    %674 = vmatpush1.bf16.msra.mxu0 0
    %675 = vmatprep.subr.bf16.mxu0 0
    %676 = vmatpush1.bf16.msra.mxu0 0
    %677 = vmatprep.subr.bf16.mxu0 0
    %678 = vmatpush1.bf16.msra.mxu0 0
    %679 = vmatprep.subr.bf16.mxu0 0
    %680 = vmatpush1.bf16.msra.mxu0 0
    %681 = vmatprep.subr.bf16.mxu0 0
    %682 = vmatpush1.bf16.msra.mxu0 0
    %683 = vmatprep.subr.bf16.mxu0 0
    %684 = vmatpush1.bf16.msra.mxu0 0
    %685 = vmatprep.subr.bf16.mxu0 0
    %686 = vmatpush1.bf16.msra.mxu0 0
    %687 = vmatprep.subr.bf16.mxu0 0
    %688 = vmatpush1.bf16.msra.mxu0 0
    %689 = vmatprep.subr.bf16.mxu0 0
    %690 = vmatpush1.bf16.msra.mxu0 0
    %691 = vmatprep.subr.bf16.mxu0 0
    %692 = vmatpush1.bf16.msra.mxu0 0
    %693 = vmatprep.mubr.bf16.mxu0 0
    %694 = vmatmul.mubr.bf16.gmra.mrb[0].mxu0 %v659
    %v695 = vpop.f32.mrb[0].mxu0
    %v696 = vadd.f32 %v645, %v695
    %v697 = vpop.f32.mrb[0].mxu0
    %v698 = vpop.f32.mrb[0].mxu0
    %v699 = vadd.f32 %v645, %v698
    %v700 = vpop.f32.mrb[0].mxu0
    %701 = vdwg.mxu0
    %v702 = vmax.f32 %v696, 0.0
    %v703 = vmax.f32 %v699, 0.0
    %v704 = vpack.c.bf16 %v703, %v702
    %v705 = vld [vmem:[%s7] sm:$0xf]
    %v706 = vld [vmem:[%s7 + $0x4] sm:$0xf]
    %v707 = vld [vmem:[%s7 + $0x8] sm:$0xf]
    %v708 = vld [vmem:[%s7 + $0xc] sm:$0xf]
    %v709 = vld [vmem:[%s7 + $0x10] sm:$0xf]
    %v710 = vld [vmem:[%s7 + $0x14] sm:$0xf]
    %v711 = vld [vmem:[%s7 + $0x18] sm:$0xf]
    %v712 = vld [vmem:[%s7 + $0x1c] sm:$0xf]
    %v713 = vlaneseq
    %v714 = vshrl.u32 %v713, 7
    %v715 = vsub.s32 0, %v714
    %v716 = vrot.slane %v87, %v715
    %v725 = vunpack.c.l.b16 %v705
    %v726 = vunpack.c.l.b16 %v706
    %v727 = vunpack.c.l.b16 %v707
    %v728 = vunpack.c.l.b16 %v708
    %v729 = vunpack.c.l.b16 %v709
    %v730 = vunpack.c.l.b16 %v710
    %v731 = vunpack.c.l.b16 %v711
    %v732 = vunpack.c.l.b16 %v712
    %v733 = vpack.c.b16 %v726, %v725
    %v734 = vpack.c.b16 %v728, %v727
    %v735 = vpack.c.b16 %v730, %v729
    %v736 = vpack.c.b16 %v732, %v731
    %v742 = vsel %vm355, %v704, 0
    %744 = vmatprep.subr.bf16.mxu0 0
    %745 = vmatpush1.bf16.msra.mxu0 %v733
    %746 = vmatprep.subr.bf16.mxu0 0
    %747 = vmatpush1.bf16.msra.mxu0 %v734
    %748 = vmatprep.subr.bf16.mxu0 0
    %749 = vmatpush1.bf16.msra.mxu0 %v735
    %750 = vmatprep.subr.bf16.mxu0 0
    %751 = vmatpush1.bf16.msra.mxu0 %v736
    %752 = vmatprep.subr.bf16.mxu0 0
    %753 = vmatpush1.bf16.msra.mxu0 0
    %754 = vmatprep.subr.bf16.mxu0 0
    %755 = vmatpush1.bf16.msra.mxu0 0
    %756 = vmatprep.subr.bf16.mxu0 0
    %757 = vmatpush1.bf16.msra.mxu0 0
    %758 = vmatprep.subr.bf16.mxu0 0
    %759 = vmatpush1.bf16.msra.mxu0 0
    %760 = vmatprep.subr.bf16.mxu0 0
    %761 = vmatpush1.bf16.msra.mxu0 0
    %762 = vmatprep.subr.bf16.mxu0 0
    %763 = vmatpush1.bf16.msra.mxu0 0
    %764 = vmatprep.subr.bf16.mxu0 0
    %765 = vmatpush1.bf16.msra.mxu0 0
    %766 = vmatprep.subr.bf16.mxu0 0
    %767 = vmatpush1.bf16.msra.mxu0 0
    %768 = vmatprep.subr.bf16.mxu0 0
    %769 = vmatpush1.bf16.msra.mxu0 0
    %770 = vmatprep.subr.bf16.mxu0 0
    %771 = vmatpush1.bf16.msra.mxu0 0
    %772 = vmatprep.subr.bf16.mxu0 0
    %773 = vmatpush1.bf16.msra.mxu0 0
    %774 = vmatprep.subr.bf16.mxu0 0
    %775 = vmatpush1.bf16.msra.mxu0 0
    %776 = vmatprep.mubr.bf16.mxu0 0
    %777 = vmatmul.mubr.bf16.gmra.mrb[0].mxu0 %v742
    %v778 = vpop.f32.mrb[0].mxu0
    %v779 = vadd.f32 %v716, %v778
    %v780 = vpop.f32.mrb[0].mxu0
    %v781 = vpop.f32.mrb[0].mxu0
    %v782 = vadd.f32 %v716, %v781
    %v783 = vpop.f32.mrb[0].mxu0
    %784 = vdwg.mxu0
    %v785 = vadd.f32 %v583, %v779
    %v786 = vadd.f32 %v584, %v782
    %787 = vst.msk [vmem:[#allocation7] sm:$0xff] %vm90, %v785
    %788 = vst.msk [vmem:[#allocation7 + $0x8] sm:$0xff] %vm90, %v786
    // Predicated region
    $region46: #{tpu_custom_call.1} parent=1 // pred_check
      _
    $region47: #{tpu_custom_call.1} parent=1 // pred_check_branch
      %790 = sbr.rel (0) target = $region49
    $region48: #{tpu_custom_call.1} parent=1 // pred_region
      %s792 = ssub.s32 256, 256
      %793 = vsyncadd [#allocation4], %s792
      %s794 = sshll.u32 [#allocation7], 4
      %s795 = int_to_ptr.vmem [resolvable:$true] %s794
      %800 = dma.vmem_to_hbm [thread:$0]  %s795, 256, %s9, [#allocation4], 128, 128, 8
    $region49: #{tpu_custom_call.1} parent=1 // pred_fallthru
      _
    // Predicated region
    $region50: #{tpu_custom_call.1} parent=1 // pred_check
      _
    $region51: #{tpu_custom_call.1} parent=1 // pred_check_branch
      %802 = sbr.rel (0) target = $region53
    $region52: #{tpu_custom_call.1} parent=1 // pred_region
      %803 = dma.done [#allocation4], 256
    $region53: #{tpu_custom_call.1} parent=1 // pred_fallthru
      _
    %804 = vsyncpa [#allocation3], 1
    %805 = vsyncpa [#allocation6], 1
    %806 = vsyncpa [#allocation4], 1

</llo_original>
